<compile_context>
chip_gen: v6e
topology: v6e:2x2x1
jax: 0.10.0
libtpu: 0.0.40
codegen_flags: <defaults>
</compile_context>

<pallas_src>
import jax
import jax.numpy as jnp
from jax.experimental import pallas as pl
from jax.experimental.pallas import tpu as pltpu

_LANE = 128


def _round_up(n, m):
    return (n + m - 1) // m * m


# ---------------------------------------------------------------------------
# Kernels
# ---------------------------------------------------------------------------
def _attention_kernel(x_ref, w1_ref, b1_ref, s_ref, bs_ref, emb_ref,
                      wcls_ref, bcls_ref, out_ref):
    f32, bf16 = jnp.float32, jnp.bfloat16
    # GAP: HW is on lanes -> cheap lane reduction; accumulate in f32.
    pooled = jnp.mean(x_ref[...].astype(f32), axis=-1)                 # (tb, C)
    # base_model head + feature_transform folded into one matmul.
    tf = jnp.dot(pooled.astype(bf16), w1_ref[...],
                 preferred_element_type=f32) + b1_ref[...]             # (tb, E)
    # dropout_prob == 0.0 -> identity
    # attention scores: (tf @ w_att + b_att) @ emb.T, folded into S / bS.
    scores = jnp.dot(tf.astype(bf16), s_ref[...],
                     preferred_element_type=f32) + bs_ref[...]         # (tb, NC)
    m = jnp.max(scores, axis=-1, keepdims=True)
    p = jnp.exp(scores - m)
    denom = jnp.sum(p, axis=-1, keepdims=True)
    weights = p * pl.reciprocal(denom, approx=True)                    # softmax
    lab = jnp.dot(weights.astype(bf16), emb_ref[...],
                  preferred_element_type=f32)                          # (tb, E)
    combined = tf + lab
    out_ref[...] = jnp.dot(combined.astype(bf16), wcls_ref[...],
                           preferred_element_type=f32) + bcls_ref[...]  # (tb, NCp)


def _labels_kernel(x_ref, labels_ref, w1_ref, b1_ref, emb_ref,
                   wcls_ref, bcls_ref, out_ref):
    f32, bf16 = jnp.float32, jnp.bfloat16
    pooled = jnp.mean(x_ref[...].astype(f32), axis=-1)                 # (tb, C)
    tf = jnp.dot(pooled.astype(bf16), w1_ref[...],
                 preferred_element_type=f32) + b1_ref[...]             # (tb, E)
    lab = jnp.dot(labels_ref[...], emb_ref[...],
                  preferred_element_type=f32)                          # (tb, E)
    combined = tf + lab
    out_ref[...] = jnp.dot(combined.astype(bf16), wcls_ref[...],
                           preferred_element_type=f32) + bcls_ref[...]


# ---------------------------------------------------------------------------
# Wrapper
# ---------------------------------------------------------------------------
def multilabel_forward(x_nchw, params, labels=None):
    B, C, H, W = x_nchw.shape
    HW = H * W
    E = params["w_ft"].shape[1]
    NC = params["emb"].shape[0]
    NC_pad = _round_up(NC, _LANE)
    f32, bf16 = jnp.float32, jnp.bfloat16

    # NCHW -> (B, C, HW): free reshape, HW lands on lanes; bf16 halves DMA bytes.
    x = x_nchw.reshape(B, C, HW).astype(bf16)

    # ---- trace-time folding (f32), then cast weights to bf16 ----
    w_base = params["w_base"].astype(f32)
    w_ft = params["w_ft"].astype(f32)
    emb_f32 = params["emb"].astype(f32)
    w1 = (w_base @ w_ft).astype(bf16)                                    # (C, E)
    b1 = params["b_base"].astype(f32) @ w_ft + params["b_ft"].astype(f32)  # (1, E)
    emb = emb_f32.astype(bf16)                                           # (NC, E)
    # lane-dense classifier: pad NC -> NC_pad with zeros
    wcls = jnp.pad(params["w_cls"].astype(f32),
                   ((0, 0), (0, NC_pad - NC))).astype(bf16)              # (E, NCp)
    bcls = jnp.pad(params["b_cls"].astype(f32), ((0, 0), (0, NC_pad - NC)))

    # batch tile: one block at the demo size; "parallel" axis lets v7x megacore
    # split larger batches across its two TensorCores.
    tb = B if B <= 8 else 8
    grid = (pl.cdiv(B, tb),)
    cp = pltpu.CompilerParams(dimension_semantics=("parallel",))
    # TODO(synk): for realistic backbone maps (C~2048, HW~49, large B) also tile
    # HW as an "arbitrary" reduction axis and set vmem_limit_bytes for v7x.

    def full(shape):
        return pl.BlockSpec(shape, lambda i, _s=shape: (0,) * len(_s))

    x_spec = pl.BlockSpec((tb, C, HW), lambda i: (i, 0, 0))
    out_spec = pl.BlockSpec((tb, NC_pad), lambda i: (i, 0))
    out_shape = jax.ShapeDtypeStruct((B, NC_pad), f32)

    if labels is None:
        s = (params["w_att"].astype(f32) @ emb_f32.T).astype(bf16)        # (E, NC)
        bs = params["b_att"].astype(f32) @ emb_f32.T                      # (1, NC)
        args = (x, w1, b1, s, bs, emb, wcls, bcls)
        in_specs = [x_spec, full((C, E)), full((1, E)), full((E, NC)),
                    full((1, NC)), full((NC, E)), full((E, NC_pad)),
                    full((1, NC_pad))]
        kernel = _attention_kernel
    else:
        args = (x, labels.astype(bf16), w1, b1, emb, wcls, bcls)
        in_specs = [x_spec, pl.BlockSpec((tb, NC), lambda i: (i, 0)),
                    full((C, E)), full((1, E)), full((NC, E)),
                    full((E, NC_pad)), full((1, NC_pad))]
        kernel = _labels_kernel

    out = pl.pallas_call(
        kernel,
        out_shape=out_shape,
        grid=grid,
        in_specs=in_specs,
        out_specs=out_spec,
        compiler_params=cp,
    )(*args)
    return out[:, :NC]


# ---------------------------------------------------------------------------
# Deterministic parameter init (shapes follow the module's __init__)
# ---------------------------------------------------------------------------
def init_params(key, C, output_dim, embedding_dim, num_classes):
    ks = jax.random.split(key, 10)
    n = lambda k, shape: (0.02 * jax.random.normal(k, shape)).astype(jnp.float32)
    return {
        # synthetic base_model head: C -> output_dim
        "w_base": n(ks[0], (C, output_dim)),
        "b_base": n(ks[1], (1, output_dim)),
        # feature_transform: output_dim -> embedding_dim
        "w_ft":   n(ks[2], (output_dim, embedding_dim)),
        "b_ft":   n(ks[3], (1, embedding_dim)),
        # Attention(embedding_dim, embedding_dim)
        "w_att":  n(ks[4], (embedding_dim, embedding_dim)),
        "b_att":  n(ks[5], (1, embedding_dim)),
        # label_embedding: (num_classes, embedding_dim)
        "emb":    n(ks[6], (num_classes, embedding_dim)),
        # classifier: embedding_dim -> num_classes
        "w_cls":  n(ks[7], (embedding_dim, num_classes)),
        "b_cls":  n(ks[8], (1, num_classes)),
    }


# ---------------------------------------------------------------------------
# Pure-JAX f32 reference (mirrors the PyTorch forward, unfused weights)
# ---------------------------------------------------------------------------
def reference_forward(x_nchw, params, labels=None):
    pooled = jnp.mean(x_nchw, axis=(2, 3))                      # base_model GAP
    feats = pooled @ params["w_base"] + params["b_base"]
    tf = feats @ params["w_ft"] + params["b_ft"]
    if labels is not None:
        lab = labels @ params["emb"]
    else:
        q = tf @ params["w_att"] + params["b_att"]
        scores = q @ params["emb"].T
        lab = jax.nn.softmax(scores, axis=-1) @ params["emb"]
    return (tf + lab) @ params["w_cls"] + params["b_cls"]


if __name__ == "__main__":
    key = jax.random.PRNGKey(0)
    k_x, k_p, k_l = jax.random.split(key, 3)

    B, C, H, W = 2, 4, 16, 16
    output_dim, embedding_dim, num_classes = 64, 32, 16

    x = jax.random.normal(k_x, (B, C, H, W), jnp.float32)
    params = init_params(k_p, C, output_dim, embedding_dim, num_classes)
    labels = (jax.random.uniform(k_l, (B, num_classes)) > 0.5).astype(jnp.float32)

    # labels=None path (attention over label embeddings)
    logits_attn = multilabel_forward(x, params, labels=None)
    # labels-provided path (labels @ label_embedding.weight)
    logits_lab = multilabel_forward(x, params, labels=labels)
    jax.block_until_ready((logits_attn, logits_lab))

    ref_attn = reference_forward(x, params, labels=None)
    ref_lab = reference_forward(x, params, labels=labels)
    # bf16 compute path + weight folding -> relaxed tolerance vs f32 reference.
    assert logits_attn.shape == (B, num_classes)
    assert logits_lab.shape == (B, num_classes)
    assert jnp.allclose(logits_attn, ref_attn, atol=2e-3, rtol=5e-2)
    assert jnp.allclose(logits_lab, ref_lab, atol=2e-3, rtol=5e-2)

    print("KERNEL_OK")
</pallas_src>

<mosaic_0001>
module attributes {stable_mosaic.version = 11 : i64} {
  func.func @_attention_kernel(%arg0: i32, %arg1: memref<2x4x256xbf16, #tpu.memory_space<vmem>>, %arg2: memref<4x32xbf16, #tpu.memory_space<vmem>>, %arg3: memref<1x32xf32, #tpu.memory_space<vmem>>, %arg4: memref<32x16xbf16, #tpu.memory_space<vmem>>, %arg5: memref<1x16xf32, #tpu.memory_space<vmem>>, %arg6: memref<16x32xbf16, #tpu.memory_space<vmem>>, %arg7: memref<32x128xbf16, #tpu.memory_space<vmem>>, %arg8: memref<1x128xf32, #tpu.memory_space<vmem>>, %arg9: memref<2x128xf32, #tpu.memory_space<vmem>>) attributes {dimension_semantics = [#tpu.dimension_semantics<parallel>], iteration_bounds = array<i64: 1>, scalar_prefetch = 0 : i64, scratch_operands = 0 : i64, tpu.core_type = #tpu.core_type<tc>, window_params = [{transform_indices = @transform_0, window_bounds = array<i64: 2, 4, 256>}, {pipeline_mode = #tpu.pipeline_mode<synchronous>, transform_indices = @transform_1, window_bounds = array<i64: 4, 32>}, {pipeline_mode = #tpu.pipeline_mode<synchronous>, transform_indices = @transform_2, window_bounds = array<i64: 1, 32>}, {pipeline_mode = #tpu.pipeline_mode<synchronous>, transform_indices = @transform_3, window_bounds = array<i64: 32, 16>}, {pipeline_mode = #tpu.pipeline_mode<synchronous>, transform_indices = @transform_4, window_bounds = array<i64: 1, 16>}, {pipeline_mode = #tpu.pipeline_mode<synchronous>, transform_indices = @transform_5, window_bounds = array<i64: 16, 32>}, {pipeline_mode = #tpu.pipeline_mode<synchronous>, transform_indices = @transform_6, window_bounds = array<i64: 32, 128>}, {pipeline_mode = #tpu.pipeline_mode<synchronous>, transform_indices = @transform_7, window_bounds = array<i64: 1, 128>}, {transform_indices = @transform_8, window_bounds = array<i64: 2, 128>}]} {
    %c0 = arith.constant 0 : index
    %c0_0 = arith.constant 0 : index
    %c0_1 = arith.constant 0 : index
    %0 = vector.load %arg1[%c0, %c0_0, %c0_1] : memref<2x4x256xbf16, #tpu.memory_space<vmem>>, vector<2x4x256xbf16>
    %1 = arith.extf %0 : vector<2x4x256xbf16> to vector<2x4x256xf32>
    %cst = arith.constant dense<0.000000e+00> : vector<2x4xf32>
    %2 = vector.multi_reduction <add>, %1, %cst [2] : vector<2x4x256xf32> to vector<2x4xf32>
    %cst_2 = arith.constant 2.560000e+02 : f32
    %3 = vector.broadcast %cst_2 : f32 to vector<2x4xf32>
    %4 = arith.divf %2, %3 : vector<2x4xf32>
    %5 = arith.truncf %4 : vector<2x4xf32> to vector<2x4xbf16>
    %c0_3 = arith.constant 0 : index
    %c0_4 = arith.constant 0 : index
    %6 = vector.load %arg2[%c0_3, %c0_4] : memref<4x32xbf16, #tpu.memory_space<vmem>>, vector<4x32xbf16>
    %cst_5 = arith.constant dense<0.000000e+00> : vector<2x32xf32>
    %7 = tpu.matmul %5, %6, %cst_5 {dimension_numbers = #tpu.dot_dimension_numbers<[1], [0], [0], [1], [0, 0, 1, 1], [], []>} : vector<2x4xbf16>, vector<4x32xbf16>, vector<2x32xf32> -> vector<2x32xf32>
    %c0_6 = arith.constant 0 : index
    %c0_7 = arith.constant 0 : index
    %8 = vector.load %arg3[%c0_6, %c0_7] : memref<1x32xf32, #tpu.memory_space<vmem>>, vector<1x32xf32>
    %9 = vector.broadcast %8 : vector<1x32xf32> to vector<2x32xf32>
    %10 = arith.addf %7, %9 : vector<2x32xf32>
    %11 = arith.truncf %10 : vector<2x32xf32> to vector<2x32xbf16>
    %c0_8 = arith.constant 0 : index
    %c0_9 = arith.constant 0 : index
    %12 = vector.load %arg4[%c0_8, %c0_9] : memref<32x16xbf16, #tpu.memory_space<vmem>>, vector<32x16xbf16>
    %cst_10 = arith.constant dense<0.000000e+00> : vector<2x16xf32>
    %13 = tpu.matmul %11, %12, %cst_10 {dimension_numbers = #tpu.dot_dimension_numbers<[1], [0], [0], [1], [0, 0, 1, 1], [], []>} : vector<2x32xbf16>, vector<32x16xbf16>, vector<2x16xf32> -> vector<2x16xf32>
    %c0_11 = arith.constant 0 : index
    %c0_12 = arith.constant 0 : index
    %14 = vector.load %arg5[%c0_11, %c0_12] : memref<1x16xf32, #tpu.memory_space<vmem>>, vector<1x16xf32>
    %15 = vector.broadcast %14 : vector<1x16xf32> to vector<2x16xf32>
    %16 = arith.addf %13, %15 : vector<2x16xf32>
    %cst_13 = arith.constant dense<0xFF800000> : vector<2xf32>
    %17 = vector.multi_reduction <maximumf>, %16, %cst_13 [1] : vector<2x16xf32> to vector<2xf32>
    %18 = vector.shape_cast %17 : vector<2xf32> to vector<2x1xf32>
    %19 = vector.broadcast %18 : vector<2x1xf32> to vector<2x16xf32>
    %20 = arith.subf %16, %19 : vector<2x16xf32>
    %21 = math.exp %20 : vector<2x16xf32>
    %cst_14 = arith.constant dense<0.000000e+00> : vector<2xf32>
    %22 = vector.multi_reduction <add>, %21, %cst_14 [1] : vector<2x16xf32> to vector<2xf32>
    %23 = vector.shape_cast %22 : vector<2xf32> to vector<2x1xf32>
    %24 = tpu.reciprocal %23 {approx = true} : vector<2x1xf32> -> vector<2x1xf32>
    %25 = vector.broadcast %24 : vector<2x1xf32> to vector<2x16xf32>
    %26 = arith.mulf %21, %25 : vector<2x16xf32>
    %27 = arith.truncf %26 : vector<2x16xf32> to vector<2x16xbf16>
    %c0_15 = arith.constant 0 : index
    %c0_16 = arith.constant 0 : index
    %28 = vector.load %arg6[%c0_15, %c0_16] : memref<16x32xbf16, #tpu.memory_space<vmem>>, vector<16x32xbf16>
    %cst_17 = arith.constant dense<0.000000e+00> : vector<2x32xf32>
    %29 = tpu.matmul %27, %28, %cst_17 {dimension_numbers = #tpu.dot_dimension_numbers<[1], [0], [0], [1], [0, 0, 1, 1], [], []>} : vector<2x16xbf16>, vector<16x32xbf16>, vector<2x32xf32> -> vector<2x32xf32>
    %30 = arith.addf %10, %29 : vector<2x32xf32>
    %31 = arith.truncf %30 : vector<2x32xf32> to vector<2x32xbf16>
    %c0_18 = arith.constant 0 : index
    %c0_19 = arith.constant 0 : index
    %32 = vector.load %arg7[%c0_18, %c0_19] : memref<32x128xbf16, #tpu.memory_space<vmem>>, vector<32x128xbf16>
    %cst_20 = arith.constant dense<0.000000e+00> : vector<2x128xf32>
    %33 = tpu.matmul %31, %32, %cst_20 {dimension_numbers = #tpu.dot_dimension_numbers<[1], [0], [0], [1], [0, 0, 1, 1], [], []>} : vector<2x32xbf16>, vector<32x128xbf16>, vector<2x128xf32> -> vector<2x128xf32>
    %c0_21 = arith.constant 0 : index
    %c0_22 = arith.constant 0 : index
    %34 = vector.load %arg8[%c0_21, %c0_22] : memref<1x128xf32, #tpu.memory_space<vmem>>, vector<1x128xf32>
    %35 = vector.broadcast %34 : vector<1x128xf32> to vector<2x128xf32>
    %36 = arith.addf %33, %35 : vector<2x128xf32>
    %c0_23 = arith.constant 0 : index
    %c0_24 = arith.constant 0 : index
    %37 = vector.load %arg9[%c0_23, %c0_24] : memref<2x128xf32, #tpu.memory_space<vmem>>, vector<2x128xf32>
    tpu.vector_store %arg9[%c0_23, %c0_24], %36 {strides = array<i32>} : memref<2x128xf32, #tpu.memory_space<vmem>>, vector<2x128xf32>,
    return
  }
  func.func @transform_0(%arg0: i32) -> (i32, i32, i32) {
    %c0_i32 = arith.constant 0 : i32
    %c0_i32_0 = arith.constant 0 : i32
    %c0_i32_1 = arith.constant 0 : i32
    return %arg0, %c0_i32, %c0_i32_0 : i32, i32, i32
  }
  func.func @transform_1(%arg0: i32) -> (i32, i32) {
    %c0_i32 = arith.constant 0 : i32
    %c0_i32_0 = arith.constant 0 : i32
    %c0_i32_1 = arith.constant 0 : i32
    return %c0_i32, %c0_i32_0 : i32, i32
  }
  func.func @transform_2(%arg0: i32) -> (i32, i32) {
    %c0_i32 = arith.constant 0 : i32
    %c0_i32_0 = arith.constant 0 : i32
    %c0_i32_1 = arith.constant 0 : i32
    return %c0_i32, %c0_i32_0 : i32, i32
  }
  func.func @transform_3(%arg0: i32) -> (i32, i32) {
    %c0_i32 = arith.constant 0 : i32
    %c0_i32_0 = arith.constant 0 : i32
    %c0_i32_1 = arith.constant 0 : i32
    return %c0_i32, %c0_i32_0 : i32, i32
  }
  func.func @transform_4(%arg0: i32) -> (i32, i32) {
    %c0_i32 = arith.constant 0 : i32
    %c0_i32_0 = arith.constant 0 : i32
    %c0_i32_1 = arith.constant 0 : i32
    return %c0_i32, %c0_i32_0 : i32, i32
  }
  func.func @transform_5(%arg0: i32) -> (i32, i32) {
    %c0_i32 = arith.constant 0 : i32
    %c0_i32_0 = arith.constant 0 : i32
    %c0_i32_1 = arith.constant 0 : i32
    return %c0_i32, %c0_i32_0 : i32, i32
  }
  func.func @transform_6(%arg0: i32) -> (i32, i32) {
    %c0_i32 = arith.constant 0 : i32
    %c0_i32_0 = arith.constant 0 : i32
    %c0_i32_1 = arith.constant 0 : i32
    return %c0_i32, %c0_i32_0 : i32, i32
  }
  func.func @transform_7(%arg0: i32) -> (i32, i32) {
    %c0_i32 = arith.constant 0 : i32
    %c0_i32_0 = arith.constant 0 : i32
    %c0_i32_1 = arith.constant 0 : i32
    return %c0_i32, %c0_i32_0 : i32, i32
  }
  func.func @transform_8(%arg0: i32) -> (i32, i32) {
    %c0_i32 = arith.constant 0 : i32
    %c0_i32_0 = arith.constant 0 : i32
    return %arg0, %c0_i32 : i32, i32
  }
}

</mosaic_0001>

<llo_original>
// kernel: tpu_custom_call.1
$region0: #{tpu_custom_call.1}
  #allocation0 [shape = 'u32[]', space=smem, size = 0x4, offset = 0x4, fixed_abs, tag = 'smem constant byte address 0x4 - core index']
  #allocation1 [shape = 'u32[144,128]{1,0:T(1,128)}', space=vmem, size = 0x12000, scoped, tag = 'internal scratch']
  %s0 = inlined_call_operand.vmem [shape: bf16[2,4,256], index: 0, kind: input, shape index: {}]
  %s1 = inlined_call_operand.hbm [shape: bf16[4,32], index: 1, kind: input, shape index: {}]
  %s2 = inlined_call_operand.vmem [shape: f32[1,32], index: 2, kind: input, shape index: {}]
  %s3 = inlined_call_operand.vmem [shape: bf16[32,16], index: 3, kind: input, shape index: {}]
  %s4 = inlined_call_operand.hbm [shape: f32[1,16], index: 4, kind: input, shape index: {}]
  %s5 = inlined_call_operand.vmem [shape: bf16[16,32], index: 5, kind: input, shape index: {}]
  %s6 = inlined_call_operand.vmem [shape: bf16[32,128], index: 6, kind: input, shape index: {}]
  %s7 = inlined_call_operand.vmem [shape: f32[1,128], index: 7, kind: input, shape index: {}]
  %s8 = inlined_call_operand.hbm [shape: f32[2,128], index: 8, kind: output, shape index: {}]
  %s9 = sld [smem:[#allocation0]]
  $region50: #{tpu_custom_call.1} parent=0
    _
  %s11 = ssub.s32 1, %s9
  %s12 = scalar_select 0, %s11, %s9
  $region1: #{tpu_custom_call.1} parent=0
    #allocation2 [shape = 'u8[1024]{0}', space=vmem, size = 0x400, scoped, tag = 'input window, operand 1, single buffered']
    #allocation3 [shape = 's32[1]{0}', space=sflag, size = 0x4, scoped, tag = 'scoped memory for tpu_custom_call.1']
    #allocation4 [shape = 's32[1]{0}', space=sflag, size = 0x4, scoped, tag = 'scoped memory for tpu_custom_call.1']
    #allocation5 [shape = 'u8[512]{0}', space=vmem, size = 0x400, scoped, tag = 'input window, operand 4, single buffered']
    #allocation6 [shape = 's32[1]{0}', space=sflag, size = 0x4, scoped, tag = 'scoped memory for tpu_custom_call.1']
    #allocation7 [shape = 'u8[1024]{0}', space=vmem, size = 0x400, scoped, tag = 'output window, operand 0, single buffered']
    %13 = vsyncpa [#allocation3], 0
    %14 = vsyncpa [#allocation6], 0
    %15 = vsyncpa [#allocation4], 0
    // Predicated region
    $region2: #{tpu_custom_call.1} parent=1 // pred_check
      _
    $region3: #{tpu_custom_call.1} parent=1 // pred_check_branch
      %17 = sbr.rel (0) target = $region5
    $region4: #{tpu_custom_call.1} parent=1 // pred_region
      _
    $region5: #{tpu_custom_call.1} parent=1 // pred_fallthru
      _
    // Predicated region
    $region6: #{tpu_custom_call.1} parent=1 // pred_check
      _
    $region7: #{tpu_custom_call.1} parent=1 // pred_check_branch
      %19 = sbr.rel (0) target = $region9
    $region8: #{tpu_custom_call.1} parent=1 // pred_region
      %s21 = ssub.s32 32, 32
      %22 = vsyncadd [#allocation3], %s21
      %s24 = sshll.u32 [#allocation2], 4
      %s25 = int_to_ptr.vmem [resolvable:$true] %s24
      %27 = dma.hbm_to_vmem [thread:$0]  %s1, 32, %s25, [#allocation3]
    $region9: #{tpu_custom_call.1} parent=1 // pred_fallthru
      _
    // Predicated region
    $region10: #{tpu_custom_call.1} parent=1 // pred_check
      _
    $region11: #{tpu_custom_call.1} parent=1 // pred_check_branch
      %29 = sbr.rel (0) target = $region13
    $region12: #{tpu_custom_call.1} parent=1 // pred_region
      _
    $region13: #{tpu_custom_call.1} parent=1 // pred_fallthru
      _
    // Predicated region
    $region14: #{tpu_custom_call.1} parent=1 // pred_check
      _
    $region15: #{tpu_custom_call.1} parent=1 // pred_check_branch
      %31 = sbr.rel (0) target = $region17
    $region16: #{tpu_custom_call.1} parent=1 // pred_region
      _
    $region17: #{tpu_custom_call.1} parent=1 // pred_fallthru
      _
    // Predicated region
    $region18: #{tpu_custom_call.1} parent=1 // pred_check
      _
    $region19: #{tpu_custom_call.1} parent=1 // pred_check_branch
      %33 = sbr.rel (0) target = $region21
    $region20: #{tpu_custom_call.1} parent=1 // pred_region
      %s35 = ssub.s32 16, 16
      %36 = vsyncadd [#allocation6], %s35
      %s38 = sshll.u32 [#allocation5], 4
      %s39 = int_to_ptr.vmem [resolvable:$true] %s38
      %41 = dma.hbm_to_vmem [thread:$0]  %s4, 16, %s39, [#allocation6]
    $region21: #{tpu_custom_call.1} parent=1 // pred_fallthru
      _
    // Predicated region
    $region22: #{tpu_custom_call.1} parent=1 // pred_check
      _
    $region23: #{tpu_custom_call.1} parent=1 // pred_check_branch
      %43 = sbr.rel (0) target = $region25
    $region24: #{tpu_custom_call.1} parent=1 // pred_region
      _
    $region25: #{tpu_custom_call.1} parent=1 // pred_fallthru
      _
    // Predicated region
    $region26: #{tpu_custom_call.1} parent=1 // pred_check
      _
    $region27: #{tpu_custom_call.1} parent=1 // pred_check_branch
      %45 = sbr.rel (0) target = $region29
    $region28: #{tpu_custom_call.1} parent=1 // pred_region
      _
    $region29: #{tpu_custom_call.1} parent=1 // pred_fallthru
      _
    // Predicated region
    $region30: #{tpu_custom_call.1} parent=1 // pred_check
      _
    $region31: #{tpu_custom_call.1} parent=1 // pred_check_branch
      %47 = sbr.rel (0) target = $region33
    $region32: #{tpu_custom_call.1} parent=1 // pred_region
      _
    $region33: #{tpu_custom_call.1} parent=1 // pred_fallthru
      _
    // Predicated region
    $region34: #{tpu_custom_call.1} parent=1 // pred_check
      _
    $region35: #{tpu_custom_call.1} parent=1 // pred_check_branch
      %49 = sbr.rel (0) target = $region37
    $region36: #{tpu_custom_call.1} parent=1 // pred_region
      %50 = dma.done [#allocation3], 32
    $region37: #{tpu_custom_call.1} parent=1 // pred_fallthru
      _
    // Predicated region
    $region38: #{tpu_custom_call.1} parent=1 // pred_check
      _
    $region39: #{tpu_custom_call.1} parent=1 // pred_check_branch
      %52 = sbr.rel (0) target = $region41
    $region40: #{tpu_custom_call.1} parent=1 // pred_region
      %53 = dma.done [#allocation6], 16
    $region41: #{tpu_custom_call.1} parent=1 // pred_fallthru
      _
    %v55 = vld [vmem:[%s0] sm:$0xf]
    %v56 = vld [vmem:[%s0 + $0x4] sm:$0xf]
    %v57 = vunpack.c.l.bf16 %v55
    %v58 = vunpack.c.l.bf16 %v56
    %v61 = vcombine.high %v57, %v57
    %v62 = vcombine.high %v58, %v58
    %vm65 = vcmask 1043456
    %v66 = vsel %vm65, %v57, 0.0
    %v67 = vsel %vm65, %v61, 0.0
    %v68 = vadd.f32 %v66, %v67
    %69 = vadd.xlane.f32.xlu0 %v68
    %v70 = vpop.xlane.xlu0 %69
    %v71 = vsel %vm65, %v58, 0.0
    %v72 = vsel %vm65, %v62, 0.0
    %v73 = vadd.f32 %v71, %v72
    %74 = vadd.xlane.f32.xlu0 %v73
    %v75 = vpop.xlane.xlu0 %74
    %v76 = vrcp.pop 256.0
    %v77 = vmul.f32 %v70, %v76
    %v78 = vmul.f32 %v75, %v76
    %v79 = vpack.c.bf16 %v77, %v77
    %v80 = vpack.c.bf16 %v78, %v78
    %v81 = vld [vmem:[#allocation2] sm:$0x3]
    %v82 = vld [vmem:[%s2] sm:$0x1]
    %v84 = vlaneseq
    %v85 = vshrl.u32 %v84, 7
    %v86 = vsub.s32 0, %v85
    %v87 = vrot.slane %v82, %v86
    %v91 = vunpack.c.l.b16 %v79
    %v92 = vunpack.c.l.b16 %v80
    %v93 = vlaneseq
    %v94 = vand.u32 %v93, 127
    %v95 = vlaneseq
    %v96 = vshrl.u32 %v95, 7
    %v97 = vsub.s32 %v94, %v96
    %v98 = vrot.slane %v91, %v97
    %v99 = vlaneseq
    %v100 = vshrl.u32 %v99, 7
    %v101 = vsub.s32 %v94, %v100
    %v102 = vrot.slane %v92, %v101
    %vm103 = vcmask 1041409
    %v104 = vsel %vm103, %v102, %v98
    %v105 = vpack.c.b16 %v104, %v104
    %vm106 = vcmask 31744
    %v108 = vsel %vm106, %v105, 0
    %vm110 = vcmask 1041408
    %v112 = vsel %vm110, %v81, 0
    %114 = vmatprep.subr.bf16.mxu0 0
    %115 = vmatpush1.bf16.msra.mxu0 0
    %116 = vmatprep.subr.bf16.mxu0 0
    %117 = vmatpush1.bf16.msra.mxu0 0
    %118 = vmatprep.subr.bf16.mxu0 0
    %119 = vmatpush1.bf16.msra.mxu0 0
    %120 = vmatprep.subr.bf16.mxu0 0
    %121 = vmatpush1.bf16.msra.mxu0 0
    %122 = vmatprep.subr.bf16.mxu0 0
    %123 = vmatpush1.bf16.msra.mxu0 0
    %124 = vmatprep.subr.bf16.mxu0 0
    %125 = vmatpush1.bf16.msra.mxu0 0
    %126 = vmatprep.subr.bf16.mxu0 0
    %127 = vmatpush1.bf16.msra.mxu0 0
    %128 = vmatprep.subr.bf16.mxu0 0
    %129 = vmatpush1.bf16.msra.mxu0 %v112
    %130 = vmatprep.subr.bf16.mxu0 0
    %131 = vmatpush2.bf16.msra.mxu0 0
    %132 = vmatprep.subr.bf16.mxu0 0
    %133 = vmatpush2.bf16.msra.mxu0 0
    %134 = vmatprep.subr.bf16.mxu0 0
    %135 = vmatpush2.bf16.msra.mxu0 0
    %136 = vmatprep.subr.bf16.mxu0 0
    %137 = vmatpush2.bf16.msra.mxu0 0
    %138 = vmatprep.subr.bf16.mxu0 0
    %139 = vmatpush2.bf16.msra.mxu0 0
    %140 = vmatprep.subr.bf16.mxu0 0
    %141 = vmatpush2.bf16.msra.mxu0 0
    %142 = vmatprep.subr.bf16.mxu0 0
    %143 = vmatpush2.bf16.msra.mxu0 0
    %144 = vmatprep.subr.bf16.mxu0 0
    %145 = vmatpush2.bf16.msra.mxu0 0
    %146 = vmatprep.mubr.bf16.mxu0 0
    %147 = vmatmul.mubr.bf16.gmra.mxu0 %v108
    %v148 = vpop.f32.mrf.mxu0
    %v149 = vadd.f32 %v87, %v148
    %v150 = vpop.f32.mrf.mxu0
    %v151 = vpop.f32.mrf.mxu0
    %v152 = vpop.f32.mrf.mxu0
    %153 = vdwg.mxu0
    %v154 = vpack.c.bf16 %v149, %v149
    %v155 = vld [vmem:[%s3] sm:$0xf]
    %v156 = vld [vmem:[%s3 + $0x4] sm:$0xf]
    %v157 = vld [vmem:[%s3 + $0x8] sm:$0xf]
    %v158 = vld [vmem:[%s3 + $0xc] sm:$0xf]
    %v159 = vld [vmem:[#allocation5] sm:$0x1]
    %v161 = vlaneseq
    %v162 = vshrl.u32 %v161, 7
    %v163 = vsub.s32 0, %v162
    %v164 = vrot.slane %v159, %v163
    %v170 = vunpack.c.l.b16 %v155
    %v171 = vunpack.c.l.b16 %v156
    %v172 = vunpack.c.l.b16 %v157
    %v173 = vunpack.c.l.b16 %v158
    %v174 = vpack.c.b16 %v171, %v170
    %v175 = vpack.c.b16 %v173, %v172
    %vm178 = vcmask 261120
    %v180 = vsel %vm178, %v154, 0
    %182 = vmatprep.subr.bf16.mxu0 0
    %183 = vmatpush1.bf16.msra.mxu0 0
    %184 = vmatprep.subr.bf16.mxu0 0
    %185 = vmatpush1.bf16.msra.mxu0 0
    %186 = vmatprep.subr.bf16.mxu0 0
    %187 = vmatpush1.bf16.msra.mxu0 0
    %188 = vmatprep.subr.bf16.mxu0 0
    %189 = vmatpush1.bf16.msra.mxu0 0
    %190 = vmatprep.subr.bf16.mxu0 0
    %191 = vmatpush1.bf16.msra.mxu0 0
    %192 = vmatprep.subr.bf16.mxu0 0
    %193 = vmatpush1.bf16.msra.mxu0 0
    %194 = vmatprep.subr.bf16.mxu0 0
    %195 = vmatpush1.bf16.msra.mxu0 %v175
    %196 = vmatprep.subr.bf16.mxu0 0
    %197 = vmatpush1.bf16.msra.mxu0 %v174
    %198 = vmatprep.subr.bf16.mxu0 0
    %199 = vmatpush2.bf16.msra.mxu0 0
    %200 = vmatprep.subr.bf16.mxu0 0
    %201 = vmatpush2.bf16.msra.mxu0 0
    %202 = vmatprep.subr.bf16.mxu0 0
    %203 = vmatpush2.bf16.msra.mxu0 0
    %204 = vmatprep.subr.bf16.mxu0 0
    %205 = vmatpush2.bf16.msra.mxu0 0
    %206 = vmatprep.subr.bf16.mxu0 0
    %207 = vmatpush2.bf16.msra.mxu0 0
    %208 = vmatprep.subr.bf16.mxu0 0
    %209 = vmatpush2.bf16.msra.mxu0 0
    %210 = vmatprep.subr.bf16.mxu0 0
    %211 = vmatpush2.bf16.msra.mxu0 0
    %212 = vmatprep.subr.bf16.mxu0 0
    %213 = vmatpush2.bf16.msra.mxu0 0
    %214 = vmatprep.mubr.bf16.mxu0 0
    %215 = vmatmul.mubr.bf16.gmra.mxu0 %v180
    %v216 = vpop.f32.mrf.mxu0
    %v217 = vadd.f32 %v164, %v216
    %v218 = vpop.f32.mrf.mxu0
    %v219 = vpop.f32.mrf.mxu0
    %v220 = vpop.f32.mrf.mxu0
    %221 = vdwg.mxu0
    %vm222 = vcmask 123904
    %v223 = vsel %vm222, %v217, -inf
    %224 = vmax.xlane.f32.xlu0 %v223
    %v225 = vpop.xlane.xlu0 %224
    %v226 = vsub.f32 %v217, %v225
    %v227 = vmul.f32 %v226, 1.442695
    %v228 = vpow.pop %v227
    %v229 = vsel %vm222, %v228, 0.0
    %230 = vadd.xlane.f32.xlu0 %v229
    %v231 = vpop.xlane.xlu0 %230
    %v232 = vrcp.pop %v231
    %v233 = vmul.f32 %v228, %v232
    %v234 = vpack.c.bf16 %v233, %v233
    %v235 = vld [vmem:[%s5] sm:$0xf]
    %v236 = vld [vmem:[%s5 + $0x4] sm:$0xf]
    %v239 = vunpack.c.l.b16 %v235
    %v240 = vunpack.c.l.b16 %v236
    %v241 = vpack.c.b16 %v240, %v239
    %vm243 = vcmask 130048
    %v245 = vsel %vm243, %v234, 0
    %247 = vmatprep.subr.bf16.mxu0 0
    %248 = vmatpush1.bf16.msra.mxu0 0
    %249 = vmatprep.subr.bf16.mxu0 0
    %250 = vmatpush1.bf16.msra.mxu0 0
    %251 = vmatprep.subr.bf16.mxu0 0
    %252 = vmatpush1.bf16.msra.mxu0 0
    %253 = vmatprep.subr.bf16.mxu0 0
    %254 = vmatpush1.bf16.msra.mxu0 0
    %255 = vmatprep.subr.bf16.mxu0 0
    %256 = vmatpush1.bf16.msra.mxu0 0
    %257 = vmatprep.subr.bf16.mxu0 0
    %258 = vmatpush1.bf16.msra.mxu0 0
    %259 = vmatprep.subr.bf16.mxu0 0
    %260 = vmatpush1.bf16.msra.mxu0 0
    %261 = vmatprep.subr.bf16.mxu0 0
    %262 = vmatpush1.bf16.msra.mxu0 %v241
    %263 = vmatprep.subr.bf16.mxu0 0
    %264 = vmatpush2.bf16.msra.mxu0 0
    %265 = vmatprep.subr.bf16.mxu0 0
    %266 = vmatpush2.bf16.msra.mxu0 0
    %267 = vmatprep.subr.bf16.mxu0 0
    %268 = vmatpush2.bf16.msra.mxu0 0
    %269 = vmatprep.subr.bf16.mxu0 0
    %270 = vmatpush2.bf16.msra.mxu0 0
    %271 = vmatprep.subr.bf16.mxu0 0
    %272 = vmatpush2.bf16.msra.mxu0 0
    %273 = vmatprep.subr.bf16.mxu0 0
    %274 = vmatpush2.bf16.msra.mxu0 0
    %275 = vmatprep.subr.bf16.mxu0 0
    %276 = vmatpush2.bf16.msra.mxu0 0
    %277 = vmatprep.subr.bf16.mxu0 0
    %278 = vmatpush2.bf16.msra.mxu0 0
    %279 = vmatprep.mubr.bf16.mxu0 0
    %280 = vmatmul.mubr.bf16.gmra.mxu0 %v245
    %v281 = vpop.f32.mrf.mxu0
    %v282 = vadd.f32 0.0, %v281
    %v283 = vpop.f32.mrf.mxu0
    %v284 = vpop.f32.mrf.mxu0
    %v285 = vpop.f32.mrf.mxu0
    %286 = vdwg.mxu0
    %v287 = vadd.f32 %v149, %v282
    %v288 = vpack.c.bf16 %v287, %v287
    %v289 = vld [vmem:[%s6] sm:$0xf]
    %v290 = vld [vmem:[%s6 + $0x4] sm:$0xf]
    %v291 = vld [vmem:[%s6 + $0x8] sm:$0xf]
    %v292 = vld [vmem:[%s6 + $0xc] sm:$0xf]
    %v293 = vld [vmem:[%s7] sm:$0x1]
    %v295 = vlaneseq
    %v296 = vshrl.u32 %v295, 7
    %v297 = vsub.s32 0, %v296
    %v298 = vrot.slane %v293, %v297
    %v304 = vunpack.c.l.b16 %v289
    %v305 = vunpack.c.l.b16 %v290
    %v306 = vunpack.c.l.b16 %v291
    %v307 = vunpack.c.l.b16 %v292
    %v308 = vpack.c.b16 %v305, %v304
    %v309 = vpack.c.b16 %v307, %v306
    %v313 = vsel %vm178, %v288, 0
    %315 = vmatprep.subr.bf16.mxu0 0
    %316 = vmatpush1.bf16.msra.mxu0 0
    %317 = vmatprep.subr.bf16.mxu0 0
    %318 = vmatpush1.bf16.msra.mxu0 0
    %319 = vmatprep.subr.bf16.mxu0 0
    %320 = vmatpush1.bf16.msra.mxu0 0
    %321 = vmatprep.subr.bf16.mxu0 0
    %322 = vmatpush1.bf16.msra.mxu0 0
    %323 = vmatprep.subr.bf16.mxu0 0
    %324 = vmatpush1.bf16.msra.mxu0 0
    %325 = vmatprep.subr.bf16.mxu0 0
    %326 = vmatpush1.bf16.msra.mxu0 0
    %327 = vmatprep.subr.bf16.mxu0 0
    %328 = vmatpush1.bf16.msra.mxu0 %v309
    %329 = vmatprep.subr.bf16.mxu0 0
    %330 = vmatpush1.bf16.msra.mxu0 %v308
    %331 = vmatprep.subr.bf16.mxu0 0
    %332 = vmatpush2.bf16.msra.mxu0 0
    %333 = vmatprep.subr.bf16.mxu0 0
    %334 = vmatpush2.bf16.msra.mxu0 0
    %335 = vmatprep.subr.bf16.mxu0 0
    %336 = vmatpush2.bf16.msra.mxu0 0
    %337 = vmatprep.subr.bf16.mxu0 0
    %338 = vmatpush2.bf16.msra.mxu0 0
    %339 = vmatprep.subr.bf16.mxu0 0
    %340 = vmatpush2.bf16.msra.mxu0 0
    %341 = vmatprep.subr.bf16.mxu0 0
    %342 = vmatpush2.bf16.msra.mxu0 0
    %343 = vmatprep.subr.bf16.mxu0 0
    %344 = vmatpush2.bf16.msra.mxu0 0
    %345 = vmatprep.subr.bf16.mxu0 0
    %346 = vmatpush2.bf16.msra.mxu0 0
    %347 = vmatprep.mubr.bf16.mxu0 0
    %348 = vmatmul.mubr.bf16.gmra.mxu0 %v313
    %v349 = vpop.f32.mrf.mxu0
    %v350 = vadd.f32 %v298, %v349
    %v351 = vpop.f32.mrf.mxu0
    %v352 = vpop.f32.mrf.mxu0
    %v353 = vpop.f32.mrf.mxu0
    %354 = vdwg.mxu0
    %355 = vst [vmem:[#allocation7] sm:$0x3] %v350
    // Predicated region
    $region42: #{tpu_custom_call.1} parent=1 // pred_check
      _
    $region43: #{tpu_custom_call.1} parent=1 // pred_check_branch
      %357 = sbr.rel (0) target = $region45
    $region44: #{tpu_custom_call.1} parent=1 // pred_region
      %s359 = ssub.s32 32, 32
      %360 = vsyncadd [#allocation4], %s359
      %s362 = sshll.u32 [#allocation7], 4
      %s363 = int_to_ptr.vmem [resolvable:$true] %s362
      %365 = dma.vmem_to_hbm [thread:$0]  %s363, 32, %s8, [#allocation4]
    $region45: #{tpu_custom_call.1} parent=1 // pred_fallthru
      _
    // Predicated region
    $region46: #{tpu_custom_call.1} parent=1 // pred_check
      _
    $region47: #{tpu_custom_call.1} parent=1 // pred_check_branch
      %367 = sbr.rel (0) target = $region49
    $region48: #{tpu_custom_call.1} parent=1 // pred_region
      %368 = dma.done [#allocation4], 32
    $region49: #{tpu_custom_call.1} parent=1 // pred_fallthru
      _
    %369 = vsyncpa [#allocation3], 1
    %370 = vsyncpa [#allocation6], 1
    %371 = vsyncpa [#allocation4], 1

</llo_original>
